<compile_context>
chip_gen: v7x
topology: tpu7x:2x2x1
jax: 0.10.0
libtpu: 0.0.40
codegen_flags: <defaults>
</compile_context>

<pallas_src>
import functools
import math

import jax
import jax.numpy as jnp
from jax import lax
from jax.experimental import pallas as pl
from jax.experimental.pallas import tpu as pltpu


def _softplus(x):
    # Stable softplus using only exp/log: softplus(x) = max(x, 0) + log(1 + exp(-|x|)).
    return jnp.maximum(x, 0.0) + jnp.log(1.0 + jnp.exp(-jnp.abs(x)))


def _survival_loss_kernel(x_ref, c_ref, t_ref, psum_ref, *, n_valid, block_b, log_eps):
    # x_ref: (K, TB) logits — time bins on sublanes, batch on lanes (lane-dense).
    x = x_ref[...].astype(jnp.float32)                    # cast in-kernel (native dtype in HBM)
    kbins, tb = x.shape

    # log(1 - h) = log(1 - sigmoid(x)) = -softplus(x): the single full-width transcendental.
    log1mh = -_softplus(x)                                # (K, TB)

    t_row = t_ref[...]                                    # (1, TB) int32 time-bin labels
    c_row = c_ref[...].astype(jnp.float32)                # (1, TB), 1 = censored

    j = lax.broadcasted_iota(jnp.int32, (kbins, tb), 0)   # time-bin index per sublane
    zero = jnp.zeros_like(log1mh)

    # Two masked sublane reductions:
    #   logSbar_raw = sum_{j < t} log(1 - h_j)   == log S_bar[t]   (unclamped)
    #   logit_t     = x[t]                        (one-hot gather via masked sum)
    logSbar_raw = jnp.sum(jnp.where(j < t_row, log1mh, zero), axis=0, keepdims=True)
    logit_t = jnp.sum(jnp.where(j == t_row, x, zero), axis=0, keepdims=True)

    # Per-sample (1, TB) transcendentals only:
    #   log(1 - h_t) = -softplus(x_t);   log h_t = x_t + log(1 - h_t)
    log1mh_t = -_softplus(logit_t)
    logSbar = jnp.maximum(logSbar_raw, log_eps)           # log(clamp(S_bar, eps))
    logS = jnp.maximum(logSbar_raw + log1mh_t, log_eps)   # log(clamp(S,     eps))
    logh = jnp.maximum(logit_t + log1mh_t, log_eps)       # log(clamp(h,     eps))

    # Mask padded batch columns; weight by censoring.
    b_idx = pl.program_id(0) * block_b + lax.broadcasted_iota(jnp.int32, (1, tb), 1)
    valid = (b_idx < n_valid).astype(jnp.float32)
    uncensored = (1.0 - c_row) * valid
    censored = c_row * valid

    # Per-block partial sums (divided by true B in the wrapper).
    psum_ref[0, 0] = jnp.sum((logh + logSbar) * uncensored)
    psum_ref[0, 1] = jnp.sum(logS * censored)


def _round_up(v, m):
    return ((v + m - 1) // m) * m


def survival_loss_pallas(out, c, t, alpha, eps=1e-7, block_b=2048):
    """out: (B, K) float logits; c: (B,) bool/float censor flag; t: (B,) int bin index."""
    B, K = out.shape
    tb = min(_round_up(block_b, 128), _round_up(B, 128))  # batch columns per block (lane mult.)
    bp = _round_up(B, tb)
    nb = bp // tb

    # Put the batch on the lane axis; pad to a whole number of blocks (masked in-kernel).
    x_t = jnp.transpose(out)                              # (K, B), native dtype
    c_row = c.astype(jnp.int32).reshape(1, B)
    t_row = t.astype(jnp.int32).reshape(1, B)
    if bp != B:
        x_t = jnp.pad(x_t, ((0, 0), (0, bp - B)))
        c_row = jnp.pad(c_row, ((0, 0), (0, bp - B)))
        t_row = jnp.pad(t_row, ((0, 0), (0, bp - B)))

    kernel = functools.partial(
        _survival_loss_kernel, n_valid=B, block_b=tb, log_eps=float(math.log(eps)))

    cost = pl.CostEstimate(
        flops=int(12 * B * K),
        transcendentals=int(2 * B * K + 2 * B),
        bytes_accessed=int(B * K * out.dtype.itemsize + 8 * B + 8 * nb))

    psums = pl.pallas_call(
        kernel,
        out_shape=jax.ShapeDtypeStruct((nb, 2), jnp.float32),
        grid=(nb,),
        in_specs=[
            pl.BlockSpec((K, tb), lambda i: (0, i)),      # logits block (K, TB)
            pl.BlockSpec((1, tb), lambda i: (0, i)),      # censor flags (1, TB)
            pl.BlockSpec((1, tb), lambda i: (0, i)),      # time labels (1, TB)
        ],
        out_specs=pl.BlockSpec((1, 2), lambda i: (i, 0), memory_space=pltpu.SMEM),
        compiler_params=pltpu.CompilerParams(dimension_semantics=("parallel",)),
        cost_estimate=cost,
    )(x_t, c_row, t_row)

    total_z = jnp.sum(psums[:, 0])
    total_s = jnp.sum(psums[:, 1])
    inv_b = 1.0 / float(B)
    l_z = -total_z * inv_b
    l_censored = -total_s * inv_b
    return l_z + (1.0 - float(alpha)) * l_censored


def survival_loss_ref(out, c, t, alpha, eps=1e-7):
    """Pure-JAX reference mirroring the PyTorch forward (sigmoid + cumprod + gather)."""
    h = jax.nn.sigmoid(out.astype(jnp.float32))
    S = jnp.cumprod(1.0 - h, axis=-1)
    t2 = t.astype(jnp.int32)[:, None]
    S_bar = jnp.concatenate([jnp.ones_like(t2, dtype=S.dtype), S], axis=-1)
    S_g = jnp.maximum(jnp.take_along_axis(S, t2, axis=-1), eps)
    h_g = jnp.maximum(jnp.take_along_axis(h, t2, axis=-1), eps)
    Sb_g = jnp.maximum(jnp.take_along_axis(S_bar, t2, axis=-1), eps)
    cf = c.astype(S.dtype)[:, None]
    logh = jnp.log(h_g) * (1.0 - cf)
    logSb = jnp.log(Sb_g) * (1.0 - cf)
    logS = jnp.log(S_g) * cf
    L_z = -jnp.mean(logh + logSb)
    L_c = -jnp.mean(logS)
    return L_z + (1 - alpha) * L_c


if __name__ == "__main__":
    key = jax.random.PRNGKey(0)
    k1, k2, k3 = jax.random.split(key, 3)

    alpha, eps = 0.3, 1e-7

    # Small case (single block; exercises padding/masking of the ragged batch).
    B, K = 13, 16
    out = jax.random.normal(k1, (B, K), dtype=jnp.float32) * 2.0   # logits
    c = jax.random.bernoulli(k2, p=0.4, shape=(B,))                # censor flags (bool)
    t = jax.random.randint(k3, (B,), 0, K, dtype=jnp.int32)        # time-bin labels

    loss = jax.block_until_ready(survival_loss_pallas(out, c, t, alpha, eps))
    ref = jax.block_until_ready(survival_loss_ref(out, c, t, alpha, eps))
    assert jnp.isfinite(loss), f"non-finite loss: {loss}"
    assert jnp.allclose(loss, ref, atol=1e-4, rtol=1e-4), f"mismatch: {loss} vs {ref}"

    # Multi-block case (grid of 3, parallel per-block partial sums + ragged last block).
    B2 = 300
    out2 = jax.random.normal(k1, (B2, K), dtype=jnp.float32) * 2.0
    c2 = jax.random.bernoulli(k2, p=0.4, shape=(B2,))
    t2 = jax.random.randint(k3, (B2,), 0, K, dtype=jnp.int32)
    loss2 = jax.block_until_ready(
        survival_loss_pallas(out2, c2, t2, alpha, eps, block_b=128))
    ref2 = jax.block_until_ready(survival_loss_ref(out2, c2, t2, alpha, eps))
    assert jnp.allclose(loss2, ref2, atol=1e-4, rtol=1e-4), f"mismatch: {loss2} vs {ref2}"

    print("KERNEL_OK")
</pallas_src>

<mosaic_0001>
module attributes {stable_mosaic.version = 11 : i64} {
  func.func @_survival_loss_kernel(%arg0: i32, %arg1: memref<16x128xf32, #tpu.memory_space<vmem>>, %arg2: memref<1x128xi32, #tpu.memory_space<vmem>>, %arg3: memref<1x128xi32, #tpu.memory_space<vmem>>, %arg4: memref<1x2xf32, #tpu.memory_space<smem>>) attributes {dimension_semantics = [#tpu.dimension_semantics<parallel>], iteration_bounds = array<i64: 1>, scalar_prefetch = 0 : i64, scratch_operands = 0 : i64, tpu.core_type = #tpu.core_type<tc>, window_params = [{transform_indices = @transform_0, window_bounds = array<i64: 16, 128>}, {transform_indices = @transform_1, window_bounds = array<i64: 1, 128>}, {transform_indices = @transform_2, window_bounds = array<i64: 1, 128>}, {transform_indices = @transform_3, window_bounds = array<i64: 1, 2>}]} {
    %c0 = arith.constant 0 : index
    %c0_0 = arith.constant 0 : index
    %0 = vector.load %arg1[%c0, %c0_0] : memref<16x128xf32, #tpu.memory_space<vmem>>, vector<16x128xf32>
    %cst = arith.constant 0.000000e+00 : f32
    %1 = vector.broadcast %cst : f32 to vector<16x128xf32>
    %2 = arith.maximumf %0, %1 : vector<16x128xf32>
    %3 = math.absf %0 : vector<16x128xf32>
    %cst_1 = arith.constant 0.000000e+00 : f32
    %4 = vector.broadcast %cst_1 : f32 to vector<16x128xf32>
    %5 = arith.subf %4, %3 : vector<16x128xf32>
    %6 = math.exp %5 : vector<16x128xf32>
    %cst_2 = arith.constant 1.000000e+00 : f32
    %7 = vector.broadcast %cst_2 : f32 to vector<16x128xf32>
    %8 = arith.addf %7, %6 : vector<16x128xf32>
    %9 = math.log %8 : vector<16x128xf32>
    %10 = arith.addf %2, %9 : vector<16x128xf32>
    %cst_3 = arith.constant 0.000000e+00 : f32
    %11 = vector.broadcast %cst_3 : f32 to vector<16x128xf32>
    %12 = arith.subf %11, %10 : vector<16x128xf32>
    %c0_4 = arith.constant 0 : index
    %c0_5 = arith.constant 0 : index
    %13 = vector.load %arg3[%c0_4, %c0_5] : memref<1x128xi32, #tpu.memory_space<vmem>>, vector<1x128xi32>
    %c0_6 = arith.constant 0 : index
    %c0_7 = arith.constant 0 : index
    %14 = vector.load %arg2[%c0_6, %c0_7] : memref<1x128xi32, #tpu.memory_space<vmem>>, vector<1x128xi32>
    %15 = arith.sitofp %14 : vector<1x128xi32> to vector<1x128xf32>
    %16 = tpu.iota {dimensions = array<i32: 0>} : vector<16x128xi32>
    %cst_8 = arith.constant 0.000000e+00 : f32
    %17 = vector.broadcast %cst_8 : f32 to vector<16x128xf32>
    %18 = vector.broadcast %13 : vector<1x128xi32> to vector<16x128xi32>
    %19 = arith.cmpi slt, %16, %18 : vector<16x128xi32>
    %20 = arith.select %19, %12, %17 : vector<16x128xi1>, vector<16x128xf32>
    %cst_9 = arith.constant dense<0.000000e+00> : vector<128xf32>
    %21 = vector.multi_reduction <add>, %20, %cst_9 [0] : vector<16x128xf32> to vector<128xf32>
    %22 = vector.shape_cast %21 : vector<128xf32> to vector<1x128xf32>
    %23 = vector.broadcast %13 : vector<1x128xi32> to vector<16x128xi32>
    %24 = arith.cmpi eq, %16, %23 : vector<16x128xi32>
    %25 = arith.select %24, %0, %17 : vector<16x128xi1>, vector<16x128xf32>
    %cst_10 = arith.constant dense<0.000000e+00> : vector<128xf32>
    %26 = vector.multi_reduction <add>, %25, %cst_10 [0] : vector<16x128xf32> to vector<128xf32>
    %27 = vector.shape_cast %26 : vector<128xf32> to vector<1x128xf32>
    %cst_11 = arith.constant 0.000000e+00 : f32
    %28 = vector.broadcast %cst_11 : f32 to vector<1x128xf32>
    %29 = arith.maximumf %27, %28 : vector<1x128xf32>
    %30 = math.absf %27 : vector<1x128xf32>
    %cst_12 = arith.constant 0.000000e+00 : f32
    %31 = vector.broadcast %cst_12 : f32 to vector<1x128xf32>
    %32 = arith.subf %31, %30 : vector<1x128xf32>
    %33 = math.exp %32 : vector<1x128xf32>
    %cst_13 = arith.constant 1.000000e+00 : f32
    %34 = vector.broadcast %cst_13 : f32 to vector<1x128xf32>
    %35 = arith.addf %34, %33 : vector<1x128xf32>
    %36 = math.log %35 : vector<1x128xf32>
    %37 = arith.addf %29, %36 : vector<1x128xf32>
    %cst_14 = arith.constant 0.000000e+00 : f32
    %38 = vector.broadcast %cst_14 : f32 to vector<1x128xf32>
    %39 = arith.subf %38, %37 : vector<1x128xf32>
    %cst_15 = arith.constant -16.1180954 : f32
    %40 = vector.broadcast %cst_15 : f32 to vector<1x128xf32>
    %41 = arith.maximumf %22, %40 : vector<1x128xf32>
    %42 = arith.addf %22, %39 : vector<1x128xf32>
    %cst_16 = arith.constant -16.1180954 : f32
    %43 = vector.broadcast %cst_16 : f32 to vector<1x128xf32>
    %44 = arith.maximumf %42, %43 : vector<1x128xf32>
    %45 = arith.addf %27, %39 : vector<1x128xf32>
    %cst_17 = arith.constant -16.1180954 : f32
    %46 = vector.broadcast %cst_17 : f32 to vector<1x128xf32>
    %47 = arith.maximumf %45, %46 : vector<1x128xf32>
    %c128_i32 = arith.constant 128 : i32
    %48 = arith.muli %arg0, %c128_i32 : i32
    %49 = tpu.iota {dimensions = array<i32: 1>} : vector<1x128xi32>
    %50 = vector.broadcast %48 : i32 to vector<1x128xi32>
    %51 = arith.addi %50, %49 : vector<1x128xi32>
    %c13_i32 = arith.constant 13 : i32
    %52 = vector.broadcast %c13_i32 : i32 to vector<1x128xi32>
    %53 = arith.cmpi slt, %51, %52 : vector<1x128xi32>
    %54 = arith.extui %53 : vector<1x128xi1> to vector<1x128xi32>
    %55 = arith.sitofp %54 : vector<1x128xi32> to vector<1x128xf32>
    %cst_18 = arith.constant 1.000000e+00 : f32
    %56 = vector.broadcast %cst_18 : f32 to vector<1x128xf32>
    %57 = arith.subf %56, %15 : vector<1x128xf32>
    %58 = arith.mulf %57, %55 : vector<1x128xf32>
    %59 = arith.mulf %15, %55 : vector<1x128xf32>
    %60 = arith.addf %47, %41 : vector<1x128xf32>
    %61 = arith.mulf %60, %58 : vector<1x128xf32>
    %62 = vector.shape_cast %61 : vector<1x128xf32> to vector<1x1x128xf32>
    %cst_19 = arith.constant dense<0.000000e+00> : vector<1xf32>
    %63 = vector.multi_reduction <add>, %62, %cst_19 [1, 2] : vector<1x1x128xf32> to vector<1xf32>
    %64 = vector.shape_cast %63 : vector<1xf32> to vector<1x1x1xf32>
    %65 = vector.extract %64[0, 0, 0] : f32 from vector<1x1x1xf32>
    %c0_20 = arith.constant 0 : index
    %c0_21 = arith.constant 0 : index
    %66 = memref.load %arg4[%c0_20, %c0_21] : memref<1x2xf32, #tpu.memory_space<smem>>
    memref.store %65, %arg4[%c0_20, %c0_21] : memref<1x2xf32, #tpu.memory_space<smem>>
    %67 = arith.mulf %44, %59 : vector<1x128xf32>
    %68 = vector.shape_cast %67 : vector<1x128xf32> to vector<1x1x128xf32>
    %cst_22 = arith.constant dense<0.000000e+00> : vector<1xf32>
    %69 = vector.multi_reduction <add>, %68, %cst_22 [1, 2] : vector<1x1x128xf32> to vector<1xf32>
    %70 = vector.shape_cast %69 : vector<1xf32> to vector<1x1x1xf32>
    %71 = vector.extract %70[0, 0, 0] : f32 from vector<1x1x1xf32>
    %c0_23 = arith.constant 0 : index
    %c1 = arith.constant 1 : index
    %72 = memref.load %arg4[%c0_23, %c1] : memref<1x2xf32, #tpu.memory_space<smem>>
    memref.store %71, %arg4[%c0_23, %c1] : memref<1x2xf32, #tpu.memory_space<smem>>
    return
  }
  func.func @transform_0(%arg0: i32) -> (i32, i32) {
    %c0_i32 = arith.constant 0 : i32
    %c0_i32_0 = arith.constant 0 : i32
    return %c0_i32, %arg0 : i32, i32
  }
  func.func @transform_1(%arg0: i32) -> (i32, i32) {
    %c0_i32 = arith.constant 0 : i32
    %c0_i32_0 = arith.constant 0 : i32
    return %c0_i32, %arg0 : i32, i32
  }
  func.func @transform_2(%arg0: i32) -> (i32, i32) {
    %c0_i32 = arith.constant 0 : i32
    %c0_i32_0 = arith.constant 0 : i32
    return %c0_i32, %arg0 : i32, i32
  }
  func.func @transform_3(%arg0: i32) -> (i32, i32) {
    %c0_i32 = arith.constant 0 : i32
    %c0_i32_0 = arith.constant 0 : i32
    return %arg0, %c0_i32 : i32, i32
  }
}

</mosaic_0001>

<llo_original>
// kernel: tpu_custom_call.1
$region0: #{tpu_custom_call.1}
  #allocation0 [shape = 'u32[]', space=smem, size = 0x4, offset = 0x4, fixed_abs, tag = 'smem constant byte address 0x4 - core index']
  #allocation1 [shape = 'u32[144,128]{1,0:T(1,128)}', space=vmem, size = 0x12000, scoped, tag = 'internal scratch']
  %s0 = inlined_call_operand.hbm [shape: f32[16,128], index: 0, kind: input, shape index: {}]
  %s1 = inlined_call_operand.vmem [shape: s32[1,128], index: 1, kind: input, shape index: {}]
  %s2 = inlined_call_operand.vmem [shape: s32[1,128], index: 2, kind: input, shape index: {}]
  %s3 = inlined_call_operand.hbm [shape: f32[1,2], index: 3, kind: output, shape index: {}]
  %s4 = sld [smem:[#allocation0]]
  $region26: #{tpu_custom_call.1} parent=0
    _
  %s6 = ssub.s32 1, %s4
  %s7 = scalar_select 0, %s6, %s4
  $region1: #{tpu_custom_call.1} parent=0
    #allocation2 [shape = 'u8[8192]{0}', space=vmem, size = 0x2000, scoped, tag = 'input window, operand 0, single buffered']
    #allocation3 [shape = 's32[1]{0}', space=sflag, size = 0x4, scoped, tag = 'scoped memory for tpu_custom_call.1']
    #allocation4 [shape = 's32[1]{0}', space=sflag, size = 0x4, scoped, tag = 'scoped memory for tpu_custom_call.1']
    #allocation5 [shape = 'u8[512]{0}', space=smem, size = 0x200, scoped, tag = 'output window, operand 0, single buffered']
    %8 = vsyncpa [#allocation3], 0
    %9 = vsyncpa [#allocation4], 0
    // Predicated region
    $region2: #{tpu_custom_call.1} parent=1 // pred_check
      _
    $region3: #{tpu_custom_call.1} parent=1 // pred_check_branch
      %11 = sbr.rel (0) target = $region5
    $region4: #{tpu_custom_call.1} parent=1 // pred_region
      %s13 = ssub.s32 256, 256
      %14 = vsyncadd [#allocation3], %s13
      %s15 = sshll.u32 [#allocation2], 4
      %s16 = int_to_ptr.vmem [resolvable:$true] %s15
      %21 = dma.hbm_to_vmem [thread:$0]  %s0, 256, %s16, [#allocation3], 128, 128, 8
    $region5: #{tpu_custom_call.1} parent=1 // pred_fallthru
      _
    // Predicated region
    $region6: #{tpu_custom_call.1} parent=1 // pred_check
      _
    $region7: #{tpu_custom_call.1} parent=1 // pred_check_branch
      %23 = sbr.rel (0) target = $region9
    $region8: #{tpu_custom_call.1} parent=1 // pred_region
      _
    $region9: #{tpu_custom_call.1} parent=1 // pred_fallthru
      _
    // Predicated region
    $region10: #{tpu_custom_call.1} parent=1 // pred_check
      _
    $region11: #{tpu_custom_call.1} parent=1 // pred_check_branch
      %25 = sbr.rel (0) target = $region13
    $region12: #{tpu_custom_call.1} parent=1 // pred_region
      _
    $region13: #{tpu_custom_call.1} parent=1 // pred_fallthru
      _
    // Predicated region
    $region14: #{tpu_custom_call.1} parent=1 // pred_check
      _
    $region15: #{tpu_custom_call.1} parent=1 // pred_check_branch
      %27 = sbr.rel (0) target = $region17
    $region16: #{tpu_custom_call.1} parent=1 // pred_region
      %28 = dma.done [#allocation3], 256
    $region17: #{tpu_custom_call.1} parent=1 // pred_fallthru
      _
    %v29 = vld [vmem:[#allocation2] sm:$0xff]
    %v30 = vld [vmem:[#allocation2 + $0x8] sm:$0xff]
    %v31 = vmax.f32 %v29, 0.0
    %v32 = vmax.f32 %v30, 0.0
    %v33 = vand.u32 2147483647, %v29
    %v34 = vand.u32 2147483647, %v30
    %v35 = vsub.f32 0.0, %v33
    %v36 = vsub.f32 0.0, %v34
    %v37 = vmul.f32 %v35, 1.442695
    %v38 = vpow.pop %v37
    %v39 = vmul.f32 %v36, 1.442695
    %v40 = vpow.pop %v39
    %v41 = vadd.f32 %v38, 1.0
    %v42 = vadd.f32 %v40, 1.0
    %v43 = vlog2.pop %v41
    %v44 = vmul.f32 %v43, 0.6931472
    %v45 = vlog2.pop %v42
    %v46 = vmul.f32 %v45, 0.6931472
    %v47 = vadd.f32 %v31, %v44
    %v48 = vadd.f32 %v32, %v46
    %v49 = vsub.f32 0.0, %v47
    %v50 = vsub.f32 0.0, %v48
    %v51 = vld [vmem:[%s2] sm:$0x1]
    %v52 = vld [vmem:[%s1] sm:$0x1]
    %v53 = vcvt.s32.f32 %v52
    %v54 = vlaneseq
    %v55 = vshrl.u32 %v54, 7
    %v56 = vadd.s32 %v55, 8
    %v57 = vlaneseq
    %v58 = vshrl.u32 %v57, 7
    %v59 = vsub.s32 0, %v58
    %v60 = vrot.slane %v51, %v59
    %vm61 = vcmp.lt.s32.totalorder %v55, %v60
    %vm62 = vcmp.lt.s32.totalorder %v56, %v60
    %v63 = vsel %vm61, %v49, 0.0
    %v64 = vsel %vm62, %v50, 0.0
    %v65 = vadd.f32 %v63, %v64
    %v66 = vrot.slane %v65, 4
    %v67 = vadd.f32 %v65, %v66
    %v68 = vrot.slane %v67, 2
    %v69 = vadd.f32 %v67, %v68
    %v70 = vrot.slane %v69, 1
    %v71 = vadd.f32 %v69, %v70
    %vm72 = vcmp.eq.s32.totalorder %v55, %v60
    %vm73 = vcmp.eq.s32.totalorder %v56, %v60
    %v74 = vsel %vm72, %v29, 0.0
    %v75 = vsel %vm73, %v30, 0.0
    %v76 = vadd.f32 %v74, %v75
    %v77 = vrot.slane %v76, 4
    %v78 = vadd.f32 %v76, %v77
    %v79 = vrot.slane %v78, 2
    %v80 = vadd.f32 %v78, %v79
    %v81 = vrot.slane %v80, 1
    %v82 = vadd.f32 %v80, %v81
    %v83 = vmax.f32 %v82, 0.0
    %v84 = vand.u32 2147483647, %v82
    %v85 = vsub.f32 0.0, %v84
    %v86 = vmul.f32 %v85, 1.442695
    %v87 = vpow.pop %v86
    %v88 = vadd.f32 %v87, 1.0
    %v89 = vlog2.pop %v88
    %v90 = vmul.f32 %v89, 0.6931472
    %v91 = vadd.f32 %v83, %v90
    %v92 = vsub.f32 0.0, %v91
    %v93 = vmax.f32 %v71, -16.118095
    %v94 = vadd.f32 %v71, %v92
    %v95 = vmax.f32 %v94, -16.118095
    %v96 = vadd.f32 %v82, %v92
    %v97 = vmax.f32 %v96, -16.118095
    %s98 = smul.u32 0, 128
    %v99 = vlaneseq
    %v100 = vand.u32 %v99, 127
    %v101 = vstv %s98
    %v102 = vadd.s32 %v101, %v100
    %vm103 = vcmp.lt.s32.totalorder %v102, 13
    %v104 = vsel %vm103, 1, 0
    %v105 = vcvt.s32.f32 %v104
    %v106 = vsub.f32 1.0, %v53
    %v107 = vmul.f32 %v106, %v105
    %v108 = vmul.f32 %v53, %v105
    %v109 = vadd.f32 %v97, %v93
    %v110 = vmul.f32 %v109, %v107
    %vm111 = vcmask 1040384
    %v112 = vsel %vm111, %v110, 0.0
    %113 = vadd.xlane.f32.xlu0 %v112
    %v114 = vpop.xlane.xlu0 %113
    %v115 = vrot.slane %v114, 4
    %v116 = vadd.f32 %v114, %v115
    %v117 = vrot.slane %v116, 2
    %v118 = vadd.f32 %v116, %v117
    %v119 = vrot.slane %v118, 1
    %v120 = vadd.f32 %v118, %v119
    %s121 = vtos %v120
    %s122 = scalar_lea.smem [#allocation5], 0
    %123 = sst [smem:[%s122]] %s121
    %v124 = vmul.f32 %v95, %v108
    %v125 = vsel %vm111, %v124, 0.0
    %126 = vadd.xlane.f32.xlu0 %v125
    %v127 = vpop.xlane.xlu0 %126
    %v128 = vrot.slane %v127, 4
    %v129 = vadd.f32 %v127, %v128
    %v130 = vrot.slane %v129, 2
    %v131 = vadd.f32 %v129, %v130
    %v132 = vrot.slane %v131, 1
    %v133 = vadd.f32 %v131, %v132
    %s134 = vtos %v133
    %s135 = scalar_lea.smem [#allocation5], 1
    %136 = sst [smem:[%s135]] %s134
    // Predicated region
    $region18: #{tpu_custom_call.1} parent=1 // pred_check
      _
    $region19: #{tpu_custom_call.1} parent=1 // pred_check_branch
      %138 = sbr.rel (0) target = $region21
    $region20: #{tpu_custom_call.1} parent=1 // pred_region
      %s140 = ssub.s32 16, 16
      %141 = vsyncadd [#allocation4], %s140
      %144 = dma.smem_to_hbm [#allocation5], 16, %s3, [#allocation4]
    $region21: #{tpu_custom_call.1} parent=1 // pred_fallthru
      _
    // Predicated region
    $region22: #{tpu_custom_call.1} parent=1 // pred_check
      _
    $region23: #{tpu_custom_call.1} parent=1 // pred_check_branch
      %146 = sbr.rel (0) target = $region25
    $region24: #{tpu_custom_call.1} parent=1 // pred_region
      %147 = dma.done [#allocation4], 16
    $region25: #{tpu_custom_call.1} parent=1 // pred_fallthru
      _
    %148 = sfence
    %149 = vsyncpa [#allocation3], 1
    %150 = vsyncpa [#allocation4], 1

</llo_original>
